<compile_context>
chip_gen: v6e
topology: v6e:2x2x1
jax: 0.10.0
libtpu: 0.0.40
codegen_flags: <defaults>
</compile_context>

<pallas_src>
import functools

import jax
import jax.numpy as jnp
from jax.experimental import pallas as pl
from jax.experimental.pallas import tpu as pltpu


def layernorm_kernel(x_ref, scale_ref, shift_ref, o_ref, *, eps):
    # x_ref: (TR, E) tile in VMEM; scale/shift: (1, E) resident blocks.
    x = x_ref[...].astype(jnp.float32)
    inv_e = 1.0 / float(x.shape[-1])

    # Two-pass statistics (numerically robust; kernel is HBM-bound so the
    # extra XLU reduction is hidden under the DMA).
    mean = jnp.sum(x, axis=-1, keepdims=True) * inv_e
    centered = x - mean
    var = jnp.sum(centered * centered, axis=-1, keepdims=True) * inv_e  # biased

    inv = jax.lax.rsqrt(var + eps)
    norm = centered * inv

    scale = scale_ref[...].astype(jnp.float32)
    shift = shift_ref[...].astype(jnp.float32)
    o_ref[...] = (norm * scale + shift).astype(o_ref.dtype)


def _round_up(a, b):
    return ((a + b - 1) // b) * b


def _cdiv(a, b):
    return -(-a // b)


def _sublane_pack(itemsize):
    # f32 -> 8 rows per vreg sublane group, bf16 -> 16, int8/fp8 -> 32.
    return 8 * max(1, 4 // itemsize)


def _chip_config():
    """(num_tensorcores, vmem_limit_bytes, block+temp budget bytes)."""
    vmem_cap = 128 * 1024 * 1024
    try:
        info = pltpu.get_tpu_info()
        vmem_cap = int(getattr(info, "vmem_capacity_bytes", vmem_cap))
    except Exception:
        pass
    if vmem_cap <= 64 * 1024 * 1024:
        # v7x-class: 64 MiB VMEM per TensorCore, 2 TensorCores per chip.
        return 2, 48 * 1024 * 1024, 40 * 1024 * 1024
    # v5e / v6e: 128 MiB VMEM, single TensorCore (grid is a serial loop).
    return 1, 96 * 1024 * 1024, 72 * 1024 * 1024


def _pick_tile_rows(R, E, itemsize, num_cores, block_budget_bytes,
                    max_tile_rows=2048):
    """Largest row tile (multiple of the sublane pack) fitting the budget."""
    pack = _sublane_pack(itemsize)
    # Per-row VMEM in one grid step: 2x double-buffered input + 2x output
    # blocks, plus ~3 whole-tile fp32 temporaries (x_f32, centered, norm).
    per_row_bytes = 4 * E * itemsize + 3 * E * 4
    cap = max(pack, (block_budget_bytes // per_row_bytes) // pack * pack)
    tr = min(max_tile_rows, cap, _round_up(R, pack))

    if num_cores > 1:
        # Target >= 2 grid steps per TensorCore so both cores get work and
        # each core's pipeline can still overlap DMA with compute.
        target_steps = 2 * num_cores
        if R >= target_steps * pack:
            tr = min(tr, _round_up(_cdiv(R, target_steps), pack))

    # Prefer an exact divisor of R (no partial last block) if one exists that
    # is not much smaller than the budget-derived tile.
    if R % tr != 0:
        d = (tr // pack) * pack
        while d >= max(pack, tr // 2):
            if R % d == 0:
                tr = d
                break
            d -= pack
    return max(pack, tr)


def layer_norm(x, scale, shift, *, eps=1e-5, tile_rows=None):
    """x: (..., E); scale, shift: (E,). Returns same shape/dtype as x."""
    orig_shape = x.shape
    E = orig_shape[-1]
    R = 1
    for d in orig_shape[:-1]:
        R *= d
    x2 = x.reshape(R, E)
    scale2 = scale.reshape(1, E)
    shift2 = shift.reshape(1, E)

    num_cores, vmem_limit, block_budget = _chip_config()
    itemsize = jnp.dtype(x.dtype).itemsize
    pack = _sublane_pack(itemsize)
    if tile_rows is None:
        tr = _pick_tile_rows(R, E, itemsize, num_cores, block_budget)
    else:
        tr = max(pack, _round_up(tile_rows, pack))

    grid = (_cdiv(R, tr),)  # no host-side padding; last block may be partial

    kernel = functools.partial(layernorm_kernel, eps=eps)

    out = pl.pallas_call(
        kernel,
        out_shape=jax.ShapeDtypeStruct((R, E), x.dtype),
        grid_spec=pltpu.PrefetchScalarGridSpec(
            num_scalar_prefetch=0,
            grid=grid,
            in_specs=[
                pl.BlockSpec((tr, E), lambda i: (i, 0)),
                pl.BlockSpec((1, E), lambda i: (0, 0)),   # resident params
                pl.BlockSpec((1, E), lambda i: (0, 0)),   # resident params
            ],
            out_specs=pl.BlockSpec((tr, E), lambda i: (i, 0)),
        ),
        compiler_params=pltpu.CompilerParams(
            dimension_semantics=("parallel",),
            vmem_limit_bytes=vmem_limit,
        ),
    )(x2, scale2, shift2)

    return out.reshape(orig_shape)


if __name__ == "__main__":
    key = jax.random.PRNGKey(0)
    B, S, E = 2, 4, 768
    x = jax.random.uniform(key, (B, S, E), dtype=jnp.float32)

    # Deterministic params (matches nn.Parameter(torch.ones/zeros(emb_dim))).
    scale = jnp.ones((E,), dtype=jnp.float32)
    shift = jnp.zeros((E,), dtype=jnp.float32)

    def ref_ln(x):
        mean = jnp.mean(x, axis=-1, keepdims=True)
        var = jnp.mean((x - mean) ** 2, axis=-1, keepdims=True)
        return scale * ((x - mean) / jnp.sqrt(var + 1e-5)) + shift

    out = layer_norm(x, scale, shift)
    jax.block_until_ready(out)
    assert out.shape == x.shape and out.dtype == x.dtype
    assert jnp.allclose(out, ref_ln(x), atol=1e-5, rtol=1e-5)

    # Also exercise the pad-free partial-last-block path (R=24, tile=16).
    key2 = jax.random.PRNGKey(1)
    x2 = jax.random.uniform(key2, (6, 4, E), dtype=jnp.float32)
    out2 = layer_norm(x2, scale, shift, tile_rows=16)
    jax.block_until_ready(out2)
    assert jnp.allclose(out2, ref_ln(x2), atol=1e-5, rtol=1e-5)

    print("KERNEL_OK")
</pallas_src>

<mosaic_0001>
module attributes {stable_mosaic.version = 11 : i64} {
  func.func @layernorm_kernel(%arg0: i32, %arg1: memref<8x768xf32, #tpu.memory_space<vmem>>, %arg2: memref<1x768xf32, #tpu.memory_space<vmem>>, %arg3: memref<1x768xf32, #tpu.memory_space<vmem>>, %arg4: memref<8x768xf32, #tpu.memory_space<vmem>>) attributes {dimension_semantics = [#tpu.dimension_semantics<parallel>], iteration_bounds = array<i64: 1>, scalar_prefetch = 0 : i64, scratch_operands = 0 : i64, tpu.core_type = #tpu.core_type<tc>, window_params = [{transform_indices = @transform_0, window_bounds = array<i64: 8, 768>}, {pipeline_mode = #tpu.pipeline_mode<synchronous>, transform_indices = @transform_1, window_bounds = array<i64: 1, 768>}, {pipeline_mode = #tpu.pipeline_mode<synchronous>, transform_indices = @transform_2, window_bounds = array<i64: 1, 768>}, {transform_indices = @transform_3, window_bounds = array<i64: 8, 768>}]} {
    %c0 = arith.constant 0 : index
    %c0_0 = arith.constant 0 : index
    %0 = vector.load %arg1[%c0, %c0_0] : memref<8x768xf32, #tpu.memory_space<vmem>>, vector<8x768xf32>
    %cst = arith.constant dense<0.000000e+00> : vector<8xf32>
    %1 = vector.multi_reduction <add>, %0, %cst [1] : vector<8x768xf32> to vector<8xf32>
    %2 = vector.shape_cast %1 : vector<8xf32> to vector<8x1xf32>
    %cst_1 = arith.constant 0.00130208337 : f32
    %3 = vector.broadcast %cst_1 : f32 to vector<8x1xf32>
    %4 = arith.mulf %2, %3 : vector<8x1xf32>
    %5 = vector.broadcast %4 : vector<8x1xf32> to vector<8x768xf32>
    %6 = arith.subf %0, %5 : vector<8x768xf32>
    %7 = arith.mulf %6, %6 : vector<8x768xf32>
    %cst_2 = arith.constant dense<0.000000e+00> : vector<8xf32>
    %8 = vector.multi_reduction <add>, %7, %cst_2 [1] : vector<8x768xf32> to vector<8xf32>
    %9 = vector.shape_cast %8 : vector<8xf32> to vector<8x1xf32>
    %cst_3 = arith.constant 0.00130208337 : f32
    %10 = vector.broadcast %cst_3 : f32 to vector<8x1xf32>
    %11 = arith.mulf %9, %10 : vector<8x1xf32>
    %cst_4 = arith.constant 9.99999974E-6 : f32
    %12 = vector.broadcast %cst_4 : f32 to vector<8x1xf32>
    %13 = arith.addf %11, %12 : vector<8x1xf32>
    %14 = math.rsqrt %13 : vector<8x1xf32>
    %15 = vector.broadcast %14 : vector<8x1xf32> to vector<8x768xf32>
    %16 = arith.mulf %6, %15 : vector<8x768xf32>
    %c0_5 = arith.constant 0 : index
    %c0_6 = arith.constant 0 : index
    %17 = vector.load %arg2[%c0_5, %c0_6] : memref<1x768xf32, #tpu.memory_space<vmem>>, vector<1x768xf32>
    %c0_7 = arith.constant 0 : index
    %c0_8 = arith.constant 0 : index
    %18 = vector.load %arg3[%c0_7, %c0_8] : memref<1x768xf32, #tpu.memory_space<vmem>>, vector<1x768xf32>
    %19 = vector.broadcast %17 : vector<1x768xf32> to vector<8x768xf32>
    %20 = arith.mulf %16, %19 : vector<8x768xf32>
    %21 = vector.broadcast %18 : vector<1x768xf32> to vector<8x768xf32>
    %22 = arith.addf %20, %21 : vector<8x768xf32>
    %c0_9 = arith.constant 0 : index
    %c0_10 = arith.constant 0 : index
    %23 = vector.load %arg4[%c0_9, %c0_10] : memref<8x768xf32, #tpu.memory_space<vmem>>, vector<8x768xf32>
    tpu.vector_store %arg4[%c0_9, %c0_10], %22 {strides = array<i32>} : memref<8x768xf32, #tpu.memory_space<vmem>>, vector<8x768xf32>,
    return
  }
  func.func @transform_0(%arg0: i32) -> (i32, i32) {
    %c0_i32 = arith.constant 0 : i32
    %c0_i32_0 = arith.constant 0 : i32
    return %arg0, %c0_i32 : i32, i32
  }
  func.func @transform_1(%arg0: i32) -> (i32, i32) {
    %c0_i32 = arith.constant 0 : i32
    %c0_i32_0 = arith.constant 0 : i32
    %c0_i32_1 = arith.constant 0 : i32
    return %c0_i32, %c0_i32_0 : i32, i32
  }
  func.func @transform_2(%arg0: i32) -> (i32, i32) {
    %c0_i32 = arith.constant 0 : i32
    %c0_i32_0 = arith.constant 0 : i32
    %c0_i32_1 = arith.constant 0 : i32
    return %c0_i32, %c0_i32_0 : i32, i32
  }
  func.func @transform_3(%arg0: i32) -> (i32, i32) {
    %c0_i32 = arith.constant 0 : i32
    %c0_i32_0 = arith.constant 0 : i32
    return %arg0, %c0_i32 : i32, i32
  }
}

</mosaic_0001>

<llo_original>
// kernel: tpu_custom_call.1
$region0: #{tpu_custom_call.1}
  #allocation0 [shape = 'u32[]', space=smem, size = 0x4, offset = 0x4, fixed_abs, tag = 'smem constant byte address 0x4 - core index']
  #allocation1 [shape = 'u32[144,128]{1,0:T(1,128)}', space=vmem, size = 0x12000, scoped, tag = 'internal scratch']
  %s0 = inlined_call_operand.hbm [shape: f32[8,768], index: 0, kind: input, shape index: {}]
  %s1 = inlined_call_operand.hbm [shape: f32[1,768], index: 1, kind: input, shape index: {}]
  %s2 = inlined_call_operand.hbm [shape: f32[1,768], index: 2, kind: input, shape index: {}]
  %s3 = inlined_call_operand.hbm [shape: f32[8,768], index: 3, kind: output, shape index: {}]
  %s4 = sld [smem:[#allocation0]]
  $region34: #{tpu_custom_call.1} parent=0
    _
  %s6 = ssub.s32 1, %s4
  %s7 = scalar_select 0, %s6, %s4
  $region1: #{tpu_custom_call.1} parent=0
    #allocation2 [shape = 'u8[24576]{0}', space=vmem, size = 0x6000, scoped, tag = 'input window, operand 0, single buffered']
    #allocation3 [shape = 's32[1]{0}', space=sflag, size = 0x4, scoped, tag = 'scoped memory for tpu_custom_call.1']
    #allocation4 [shape = 's32[1]{0}', space=sflag, size = 0x4, scoped, tag = 'scoped memory for tpu_custom_call.1']
    #allocation5 [shape = 'u8[3072]{0}', space=vmem, size = 0xc00, scoped, tag = 'input window, operand 1, single buffered']
    #allocation6 [shape = 's32[1]{0}', space=sflag, size = 0x4, scoped, tag = 'scoped memory for tpu_custom_call.1']
    #allocation7 [shape = 'u8[3072]{0}', space=vmem, size = 0xc00, scoped, tag = 'input window, operand 2, single buffered']
    #allocation8 [shape = 'u8[24576]{0}', space=vmem, size = 0x6000, scoped, tag = 'output window, operand 0, single buffered']
    %8 = vsyncpa [#allocation3], 0
    %9 = vsyncpa [#allocation6], 0
    %10 = vsyncpa [#allocation4], 0
    // Predicated region
    $region2: #{tpu_custom_call.1} parent=1 // pred_check
      _
    $region3: #{tpu_custom_call.1} parent=1 // pred_check_branch
      %12 = sbr.rel (0) target = $region5
    $region4: #{tpu_custom_call.1} parent=1 // pred_region
      %s14 = ssub.s32 768, 768
      %15 = vsyncadd [#allocation3], %s14
      %s17 = sshll.u32 [#allocation2], 4
      %s18 = int_to_ptr.vmem [resolvable:$true] %s17
      %20 = dma.hbm_to_vmem [thread:$0]  %s0, 768, %s18, [#allocation3]
    $region5: #{tpu_custom_call.1} parent=1 // pred_fallthru
      _
    // Predicated region
    $region6: #{tpu_custom_call.1} parent=1 // pred_check
      _
    $region7: #{tpu_custom_call.1} parent=1 // pred_check_branch
      %22 = sbr.rel (0) target = $region9
    $region8: #{tpu_custom_call.1} parent=1 // pred_region
      %s24 = ssub.s32 96, 96
      %25 = vsyncadd [#allocation6], %s24
      %s27 = sshll.u32 [#allocation5], 4
      %s28 = int_to_ptr.vmem [resolvable:$true] %s27
      %30 = dma.hbm_to_vmem [thread:$0]  %s1, 96, %s28, [#allocation6]
    $region9: #{tpu_custom_call.1} parent=1 // pred_fallthru
      _
    // Predicated region
    $region10: #{tpu_custom_call.1} parent=1 // pred_check
      _
    $region11: #{tpu_custom_call.1} parent=1 // pred_check_branch
      %32 = sbr.rel (0) target = $region13
    $region12: #{tpu_custom_call.1} parent=1 // pred_region
      %s34 = ssub.s32 96, 96
      %35 = vsyncadd [#allocation6], %s34
      %s37 = sshll.u32 [#allocation7], 4
      %s38 = int_to_ptr.vmem [resolvable:$true] %s37
      %40 = dma.hbm_to_vmem [thread:$0]  %s2, 96, %s38, [#allocation6]
    $region13: #{tpu_custom_call.1} parent=1 // pred_fallthru
      _
    // Predicated region
    $region14: #{tpu_custom_call.1} parent=1 // pred_check
      _
    $region15: #{tpu_custom_call.1} parent=1 // pred_check_branch
      %42 = sbr.rel (0) target = $region17
    $region16: #{tpu_custom_call.1} parent=1 // pred_region
      %43 = dma.done [#allocation3], 768
    $region17: #{tpu_custom_call.1} parent=1 // pred_fallthru
      _
    // Predicated region
    $region18: #{tpu_custom_call.1} parent=1 // pred_check
      _
    $region19: #{tpu_custom_call.1} parent=1 // pred_check_branch
      %45 = sbr.rel (0) target = $region21
    $region20: #{tpu_custom_call.1} parent=1 // pred_region
      %46 = dma.done [#allocation6], 96
    $region21: #{tpu_custom_call.1} parent=1 // pred_fallthru
      _
    // Predicated region
    $region22: #{tpu_custom_call.1} parent=1 // pred_check
      _
    $region23: #{tpu_custom_call.1} parent=1 // pred_check_branch
      %48 = sbr.rel (0) target = $region25
    $region24: #{tpu_custom_call.1} parent=1 // pred_region
      %49 = dma.done [#allocation6], 96
    $region25: #{tpu_custom_call.1} parent=1 // pred_fallthru
      _
    %v50 = vld [vmem:[#allocation2] sm:$0xff]
    %v51 = vld [vmem:[#allocation2 + $0x8] sm:$0xff]
    %v52 = vld [vmem:[#allocation2 + $0x10] sm:$0xff]
    %v53 = vld [vmem:[#allocation2 + $0x18] sm:$0xff]
    %v54 = vld [vmem:[#allocation2 + $0x20] sm:$0xff]
    %v55 = vld [vmem:[#allocation2 + $0x28] sm:$0xff]
    %v56 = vadd.f32 %v50, %v51
    %v57 = vadd.f32 %v56, %v52
    %v58 = vadd.f32 %v57, %v53
    %v59 = vadd.f32 %v58, %v54
    %v60 = vadd.f32 %v59, %v55
    %61 = vadd.xlane.f32.xlu0 %v60
    %v62 = vpop.xlane.xlu0 %61
    %v63 = vmul.f32 %v62, 0.0013020834
    %v64 = vsub.f32 %v50, %v63
    %v65 = vsub.f32 %v51, %v63
    %v66 = vsub.f32 %v52, %v63
    %v67 = vsub.f32 %v53, %v63
    %v68 = vsub.f32 %v54, %v63
    %v69 = vsub.f32 %v55, %v63
    %v70 = vmul.f32 %v64, %v64
    %v71 = vmul.f32 %v65, %v65
    %v72 = vmul.f32 %v66, %v66
    %v73 = vmul.f32 %v67, %v67
    %v74 = vmul.f32 %v68, %v68
    %v75 = vmul.f32 %v69, %v69
    %v76 = vadd.f32 %v70, %v71
    %v77 = vadd.f32 %v76, %v72
    %v78 = vadd.f32 %v77, %v73
    %v79 = vadd.f32 %v78, %v74
    %v80 = vadd.f32 %v79, %v75
    %81 = vadd.xlane.f32.xlu0 %v80
    %v82 = vpop.xlane.xlu0 %81
    %v83 = vmul.f32 %v82, 0.0013020834
    %v84 = vadd.f32 %v83, 1e-05
    %v85 = vrsqrt.pop %v84
    %v86 = vmul.f32 %v64, %v85
    %v87 = vmul.f32 %v65, %v85
    %v88 = vmul.f32 %v66, %v85
    %v89 = vmul.f32 %v67, %v85
    %v90 = vmul.f32 %v68, %v85
    %v91 = vmul.f32 %v69, %v85
    %v92 = vld [vmem:[#allocation5] sm:$0x3f]
    %v93 = vld [vmem:[#allocation7] sm:$0x3f]
    %v95 = vlaneseq
    %v96 = vshrl.u32 %v95, 7
    %v97 = vsub.s32 0, %v96
    %v98 = vrot.slane %v92, %v97
    %v99 = vlaneseq
    %v100 = vshrl.u32 %v99, 7
    %v101 = vsub.s32 1, %v100
    %v102 = vrot.slane %v92, %v101
    %v103 = vlaneseq
    %v104 = vshrl.u32 %v103, 7
    %v105 = vsub.s32 2, %v104
    %v106 = vrot.slane %v92, %v105
    %v107 = vlaneseq
    %v108 = vshrl.u32 %v107, 7
    %v109 = vsub.s32 3, %v108
    %v110 = vrot.slane %v92, %v109
    %v111 = vlaneseq
    %v112 = vshrl.u32 %v111, 7
    %v113 = vsub.s32 4, %v112
    %v114 = vrot.slane %v92, %v113
    %v115 = vlaneseq
    %v116 = vshrl.u32 %v115, 7
    %v117 = vsub.s32 5, %v116
    %v118 = vrot.slane %v92, %v117
    %v125 = vmul.f32 %v86, %v98
    %v126 = vmul.f32 %v87, %v102
    %v127 = vmul.f32 %v88, %v106
    %v128 = vmul.f32 %v89, %v110
    %v129 = vmul.f32 %v90, %v114
    %v130 = vmul.f32 %v91, %v118
    %v132 = vlaneseq
    %v133 = vshrl.u32 %v132, 7
    %v134 = vsub.s32 0, %v133
    %v135 = vrot.slane %v93, %v134
    %v136 = vlaneseq
    %v137 = vshrl.u32 %v136, 7
    %v138 = vsub.s32 1, %v137
    %v139 = vrot.slane %v93, %v138
    %v140 = vlaneseq
    %v141 = vshrl.u32 %v140, 7
    %v142 = vsub.s32 2, %v141
    %v143 = vrot.slane %v93, %v142
    %v144 = vlaneseq
    %v145 = vshrl.u32 %v144, 7
    %v146 = vsub.s32 3, %v145
    %v147 = vrot.slane %v93, %v146
    %v148 = vlaneseq
    %v149 = vshrl.u32 %v148, 7
    %v150 = vsub.s32 4, %v149
    %v151 = vrot.slane %v93, %v150
    %v152 = vlaneseq
    %v153 = vshrl.u32 %v152, 7
    %v154 = vsub.s32 5, %v153
    %v155 = vrot.slane %v93, %v154
    %v162 = vadd.f32 %v125, %v135
    %v163 = vadd.f32 %v126, %v139
    %v164 = vadd.f32 %v127, %v143
    %v165 = vadd.f32 %v128, %v147
    %v166 = vadd.f32 %v129, %v151
    %v167 = vadd.f32 %v130, %v155
    %168 = vst [vmem:[#allocation8] sm:$0xff] %v162
    %169 = vst [vmem:[#allocation8 + $0x8] sm:$0xff] %v163
    %170 = vst [vmem:[#allocation8 + $0x10] sm:$0xff] %v164
    %171 = vst [vmem:[#allocation8 + $0x18] sm:$0xff] %v165
    %172 = vst [vmem:[#allocation8 + $0x20] sm:$0xff] %v166
    %173 = vst [vmem:[#allocation8 + $0x28] sm:$0xff] %v167
    // Predicated region
    $region26: #{tpu_custom_call.1} parent=1 // pred_check
      _
    $region27: #{tpu_custom_call.1} parent=1 // pred_check_branch
      %175 = sbr.rel (0) target = $region29
    $region28: #{tpu_custom_call.1} parent=1 // pred_region
      %s177 = ssub.s32 768, 768
      %178 = vsyncadd [#allocation4], %s177
      %s180 = sshll.u32 [#allocation8], 4
      %s181 = int_to_ptr.vmem [resolvable:$true] %s180
      %183 = dma.vmem_to_hbm [thread:$0]  %s181, 768, %s3, [#allocation4]
    $region29: #{tpu_custom_call.1} parent=1 // pred_fallthru
      _
    // Predicated region
    $region30: #{tpu_custom_call.1} parent=1 // pred_check
      _
    $region31: #{tpu_custom_call.1} parent=1 // pred_check_branch
      %185 = sbr.rel (0) target = $region33
    $region32: #{tpu_custom_call.1} parent=1 // pred_region
      %186 = dma.done [#allocation4], 768
    $region33: #{tpu_custom_call.1} parent=1 // pred_fallthru
      _
    %187 = vsyncpa [#allocation3], 1
    %188 = vsyncpa [#allocation6], 1
    %189 = vsyncpa [#allocation4], 1

</llo_original>
